<compile_context>
chip_gen: v6e
topology: v6e:2x2x1
jax: 0.10.0
libtpu: 0.0.40
codegen_flags: <defaults>
</compile_context>

<pallas_src>
import functools

import jax
import jax.numpy as jnp
from jax import lax
from jax.experimental import pallas as pl
from jax.experimental.pallas import tpu as pltpu

_EPS = 1e-12  # F.normalize(p=2) clamp


# ---------------------------------------------------------------------------
# Phase 0: one-shot row normalization of q (scaled by 1/temperature) and k.
# ---------------------------------------------------------------------------
def _prep_kernel(q_ref, k_ref, qn_ref, kn_ref, *, inv_temp):
    q = q_ref[...].astype(jnp.float32)
    k = k_ref[...].astype(jnp.float32)
    q_ss = jnp.sum(q * q, axis=1, keepdims=True)
    k_ss = jnp.sum(k * k, axis=1, keepdims=True)
    # F.normalize(x, p=2): x / max(||x||, eps) == x * rsqrt(max(||x||^2, eps^2))
    q_scale = lax.rsqrt(jnp.maximum(q_ss, _EPS * _EPS)) * inv_temp
    k_scale = lax.rsqrt(jnp.maximum(k_ss, _EPS * _EPS))
    qn_ref[...] = (q * q_scale).astype(qn_ref.dtype)
    kn_ref[...] = (k * k_scale).astype(kn_ref.dtype)
    # (the reference's redundant post-normalization divides by the ==1 norms
    #  are dropped; ulp-level difference only)


# ---------------------------------------------------------------------------
# Phase 1: per row tile, accumulate over k^T column tiles:
#   num[i] = sum_j exp(logits[i,j] - logits[i,i])
#   sen[i] = sum_{j != i} exp(logits[i,j]) + 1
# Column order is rotated so the diagonal block is the first column step.
# ---------------------------------------------------------------------------
def _phase1_kernel(qn_ref, knt_ref, num_ref, sen_ref, diag_ref):
    i = pl.program_id(0)
    j = pl.program_id(1)
    tm = qn_ref.shape[0]
    tn = knt_ref.shape[1]
    c = tn // tm  # row tiles per column tile

    logits = lax.dot_general(qn_ref[...], knt_ref[...],
                             (((1,), (0,)), ((), ())),
                             preferred_element_type=jnp.float32)  # (TM, TN)

    @pl.when(j == 0)
    def _init():
        # Rotated column order => this block contains the row tile's diagonal,
        # at local column (i % c) * TM + r for row r.
        col = lax.broadcasted_iota(jnp.int32, (tm, tn), 1)
        row = lax.broadcasted_iota(jnp.int32, (tm, 1), 0)
        dmask = col == row + (i % c) * tm                         # (TM, TN)
        d = jnp.sum(jnp.where(dmask, logits, 0.0), axis=1, keepdims=True)
        diag_ref[...] = d
        e = jnp.exp(logits - d)                                   # diag term == 1
        num_ref[...] = jnp.sum(e, axis=1, keepdims=True)
        # structural exclusion of the positive pair (no cancellation):
        sen_ref[...] = jnp.sum(jnp.where(dmask, 0.0, e), axis=1, keepdims=True)

    @pl.when(j > 0)
    def _accum():
        e = jnp.exp(logits - diag_ref[...])
        s = jnp.sum(e, axis=1, keepdims=True)
        num_ref[...] += s
        sen_ref[...] += s

    @pl.when(j == pl.num_programs(1) - 1)
    def _finalize():
        # sen[i] = sum_{j != i} exp(logits[i,j]) + exp(0)
        sen_ref[...] = sen_ref[...] * jnp.exp(diag_ref[...]) + 1.0


# ---------------------------------------------------------------------------
# Phase 2: per-row partial of
#   loss = (1/N^2) * sum_{i,j} log(num[i] + sen[j]) - (1/N) * sum_j log(num[j])
# fully parallel over row tiles; tiny final sum happens in the wrapper.
# ---------------------------------------------------------------------------
def _phase2_kernel(num_ref, sen_row_ref, part_ref):
    n = sen_row_ref.shape[1]
    num = num_ref[...]                                   # (TM2, 1)
    sen = sen_row_ref[...]                               # (1, N)
    pair_logsum = jnp.sum(jnp.log(num + sen), axis=1, keepdims=True)
    part_ref[...] = pair_logsum - float(n) * jnp.log(num)


# ---------------------------------------------------------------------------
# Tiling / VMEM planning
# ---------------------------------------------------------------------------
def _vmem_limit_and_budget():
    try:
        cap = int(pltpu.get_tpu_info().vmem_capacity_bytes)
        if cap < 8 * 1024 * 1024:
            raise ValueError("implausible VMEM capacity")
        # ~48 MiB on v7x (64 MiB physical), ~96 MiB on v5e/v6e (128 MiB).
        limit = min((cap * 3) // 4, 100 * 1024 * 1024)
        return limit, (limit * 3) // 4
    except Exception:
        # Unknown generation: stay under every default scoped VMEM limit.
        return None, 12 * 1024 * 1024


def _pick_prep_tile(n, d, budget):
    for t in (1024, 512, 256, 128, 64, 32, 16, 8):
        if n % t == 0 and 10 * t * d * 4 <= budget:
            return t
    return n


def _plan_phase1_tiles(n, d, mm_itemsize, budget):
    tm_cands = [t for t in (512, 256, 128, 64, 32, 16, 8) if n % t == 0] or [n]
    divisors = sorted({n // k for k in range(1, n + 1) if n % k == 0}, reverse=True)
    for tm in tm_cands:
        for tn in divisors:
            if tn < tm or tn % tm != 0:
                continue
            if tn != n and tn % 128 != 0:        # lane-tiling rule for k^T block
                continue
            fixed = 2 * tm * d * mm_itemsize     # q row tile (double buffered)
            fixed += 2 * d * tn * mm_itemsize    # k^T column block (double buffered)
            fixed += (4 * tm + tm) * 4           # num/sen out blocks + diag scratch
            work = 8 * tm * tn * 4               # logits/exp/mask temporaries (f32)
            if fixed + work <= budget:
                return tm, tn
    return tm_cands[-1], n


def _pick_phase2_tile(n, budget):
    for t in (1024, 512, 256, 128, 64, 32, 16, 8):
        if n % t == 0 and (2 * n * 4 + 16 * t + 4 * t * n * 4) <= budget:
            return t
    return 8 if n % 8 == 0 else n


# ---------------------------------------------------------------------------
# Wrapper
# ---------------------------------------------------------------------------
def infonce_loss(q, k, temperature=0.07, use_bf16_matmul=False):
    n, d = q.shape
    assert k.shape == (n, d)

    mm_dtype = jnp.bfloat16 if use_bf16_matmul else jnp.float32
    mm_isz = jnp.dtype(mm_dtype).itemsize
    vmem_limit, budget = _vmem_limit_and_budget()

    def cparams(sem):
        return pltpu.CompilerParams(dimension_semantics=sem,
                                    vmem_limit_bytes=vmem_limit)

    # ---- Phase 0: normalize q (x 1/T) and k once ----
    tm0 = _pick_prep_tile(n, d, budget)
    qn, kn = pl.pallas_call(
        functools.partial(_prep_kernel, inv_temp=1.0 / float(temperature)),
        grid=(n // tm0,),
        in_specs=[pl.BlockSpec((tm0, d), lambda i: (i, 0)),
                  pl.BlockSpec((tm0, d), lambda i: (i, 0))],
        out_specs=[pl.BlockSpec((tm0, d), lambda i: (i, 0)),
                   pl.BlockSpec((tm0, d), lambda i: (i, 0))],
        out_shape=[jax.ShapeDtypeStruct((n, d), mm_dtype),
                   jax.ShapeDtypeStruct((n, d), mm_dtype)],
        compiler_params=cparams(("parallel",)),
    )(q, k)

    knt = jnp.swapaxes(kn, 0, 1)  # (D, N): one-off layout plumbing for the MXU

    # ---- Phase 1: num / sen per row ----
    tm, tn = _plan_phase1_tiles(n, d, mm_isz, budget)
    c, n_col = tn // tm, n // tn
    num, sen = pl.pallas_call(
        _phase1_kernel,
        grid=(n // tm, n_col),
        in_specs=[
            pl.BlockSpec((tm, d), lambda i, j: (i, 0)),
            # rotated column order: diagonal block first for every row tile
            pl.BlockSpec((d, tn), lambda i, j: (0, (i // c + j) % n_col)),
        ],
        out_specs=[pl.BlockSpec((tm, 1), lambda i, j: (i, 0)),
                   pl.BlockSpec((tm, 1), lambda i, j: (i, 0))],
        out_shape=[jax.ShapeDtypeStruct((n, 1), jnp.float32),
                   jax.ShapeDtypeStruct((n, 1), jnp.float32)],
        scratch_shapes=[pltpu.VMEM((tm, 1), jnp.float32)],
        compiler_params=cparams(("parallel", "arbitrary")),
    )(qn, knt)

    sen_row = jnp.swapaxes(sen, 0, 1)  # (1, N): tiny one-off transpose

    # ---- Phase 2: parallel per-row partial loss ----
    tm2 = _pick_phase2_tile(n, budget)
    part = pl.pallas_call(
        _phase2_kernel,
        grid=(n // tm2,),
        in_specs=[pl.BlockSpec((tm2, 1), lambda i: (i, 0)),
                  pl.BlockSpec((1, n), lambda i: (0, 0))],
        out_specs=pl.BlockSpec((tm2, 1), lambda i: (i, 0)),
        out_shape=jax.ShapeDtypeStruct((n, 1), jnp.float32),
        compiler_params=cparams(("parallel",)),
    )(num, sen_row)

    # loss = (1/N^2) * sum_{i,j} log(num[i]+sen[j]) - (1/N) * sum_j log(num[j])
    return jnp.sum(part) / float(n * n)


# ---------------------------------------------------------------------------
# Pure-JAX mirror of the PyTorch forward, for correctness checking.
# ---------------------------------------------------------------------------
def infonce_loss_ref(q, k, temperature=0.07):
    def normalize(x):
        nrm = jnp.linalg.norm(x, axis=-1, keepdims=True)
        return x / jnp.maximum(nrm, 1e-12)

    q = normalize(q)
    k = normalize(k)
    sim = q @ k.T
    sim = sim / jnp.linalg.norm(q, axis=-1, keepdims=True)
    sim = sim / jnp.linalg.norm(k, axis=-1, keepdims=True).T
    logits = sim / temperature
    diag = jnp.diag(logits)
    negatives = logits - jnp.diag(jnp.diagonal(logits))
    exp_logits = jnp.exp(logits - diag[:, None])
    numerator = jnp.sum(exp_logits, axis=-1)
    denominator = exp_logits.sum(axis=-1)[:, None] + jnp.sum(jnp.exp(negatives), axis=-1)
    loss = -jnp.log(numerator / denominator)
    return loss.mean()


if __name__ == "__main__":
    key = jax.random.PRNGKey(0)
    kq, kk = jax.random.split(key)
    N, D = 8, 32  # batch of 8 embeddings, hidden dim 32
    q = jax.random.normal(kq, (N, D), dtype=jnp.float32)
    k = jax.random.normal(kk, (N, D), dtype=jnp.float32)

    loss = infonce_loss(q, k, temperature=0.07)
    jax.block_until_ready(loss)

    ref = infonce_loss_ref(q, k, temperature=0.07)
    assert jnp.allclose(loss, ref, rtol=1e-4, atol=1e-5), (loss, ref)

    print("KERNEL_OK")
</pallas_src>

<mosaic_0001>
module attributes {stable_mosaic.version = 11 : i64} {
  func.func @_prep_kernel(%arg0: i32, %arg1: memref<8x32xf32, #tpu.memory_space<vmem>>, %arg2: memref<8x32xf32, #tpu.memory_space<vmem>>, %arg3: memref<8x32xf32, #tpu.memory_space<vmem>>, %arg4: memref<8x32xf32, #tpu.memory_space<vmem>>) attributes {dimension_semantics = [#tpu.dimension_semantics<parallel>], iteration_bounds = array<i64: 1>, scalar_prefetch = 0 : i64, scratch_operands = 0 : i64, tpu.core_type = #tpu.core_type<tc>, window_params = [{transform_indices = @transform_0, window_bounds = array<i64: 8, 32>}, {transform_indices = @transform_1, window_bounds = array<i64: 8, 32>}, {transform_indices = @transform_2, window_bounds = array<i64: 8, 32>}, {transform_indices = @transform_3, window_bounds = array<i64: 8, 32>}]} {
    %c0 = arith.constant 0 : index
    %c0_0 = arith.constant 0 : index
    %0 = vector.load %arg1[%c0, %c0_0] : memref<8x32xf32, #tpu.memory_space<vmem>>, vector<8x32xf32>
    %c0_1 = arith.constant 0 : index
    %c0_2 = arith.constant 0 : index
    %1 = vector.load %arg2[%c0_1, %c0_2] : memref<8x32xf32, #tpu.memory_space<vmem>>, vector<8x32xf32>
    %2 = arith.mulf %0, %0 : vector<8x32xf32>
    %cst = arith.constant dense<0.000000e+00> : vector<8xf32>
    %3 = vector.multi_reduction <add>, %2, %cst [1] : vector<8x32xf32> to vector<8xf32>
    %4 = vector.shape_cast %3 : vector<8xf32> to vector<8x1xf32>
    %5 = arith.mulf %1, %1 : vector<8x32xf32>
    %cst_3 = arith.constant dense<0.000000e+00> : vector<8xf32>
    %6 = vector.multi_reduction <add>, %5, %cst_3 [1] : vector<8x32xf32> to vector<8xf32>
    %7 = vector.shape_cast %6 : vector<8xf32> to vector<8x1xf32>
    %cst_4 = arith.constant 1.000000e-24 : f32
    %8 = vector.broadcast %cst_4 : f32 to vector<8x1xf32>
    %9 = arith.maximumf %4, %8 : vector<8x1xf32>
    %10 = math.rsqrt %9 : vector<8x1xf32>
    %cst_5 = arith.constant 14.2857141 : f32
    %11 = vector.broadcast %cst_5 : f32 to vector<8x1xf32>
    %12 = arith.mulf %10, %11 : vector<8x1xf32>
    %cst_6 = arith.constant 1.000000e-24 : f32
    %13 = vector.broadcast %cst_6 : f32 to vector<8x1xf32>
    %14 = arith.maximumf %7, %13 : vector<8x1xf32>
    %15 = math.rsqrt %14 : vector<8x1xf32>
    %16 = vector.broadcast %12 : vector<8x1xf32> to vector<8x32xf32>
    %17 = arith.mulf %0, %16 : vector<8x32xf32>
    %c0_7 = arith.constant 0 : index
    %c0_8 = arith.constant 0 : index
    %18 = vector.load %arg3[%c0_7, %c0_8] : memref<8x32xf32, #tpu.memory_space<vmem>>, vector<8x32xf32>
    tpu.vector_store %arg3[%c0_7, %c0_8], %17 {strides = array<i32>} : memref<8x32xf32, #tpu.memory_space<vmem>>, vector<8x32xf32>,
    %19 = vector.broadcast %15 : vector<8x1xf32> to vector<8x32xf32>
    %20 = arith.mulf %1, %19 : vector<8x32xf32>
    %c0_9 = arith.constant 0 : index
    %c0_10 = arith.constant 0 : index
    %21 = vector.load %arg4[%c0_9, %c0_10] : memref<8x32xf32, #tpu.memory_space<vmem>>, vector<8x32xf32>
    tpu.vector_store %arg4[%c0_9, %c0_10], %20 {strides = array<i32>} : memref<8x32xf32, #tpu.memory_space<vmem>>, vector<8x32xf32>,
    return
  }
  func.func @transform_0(%arg0: i32) -> (i32, i32) {
    %c0_i32 = arith.constant 0 : i32
    %c0_i32_0 = arith.constant 0 : i32
    return %arg0, %c0_i32 : i32, i32
  }
  func.func @transform_1(%arg0: i32) -> (i32, i32) {
    %c0_i32 = arith.constant 0 : i32
    %c0_i32_0 = arith.constant 0 : i32
    return %arg0, %c0_i32 : i32, i32
  }
  func.func @transform_2(%arg0: i32) -> (i32, i32) {
    %c0_i32 = arith.constant 0 : i32
    %c0_i32_0 = arith.constant 0 : i32
    return %arg0, %c0_i32 : i32, i32
  }
  func.func @transform_3(%arg0: i32) -> (i32, i32) {
    %c0_i32 = arith.constant 0 : i32
    %c0_i32_0 = arith.constant 0 : i32
    return %arg0, %c0_i32 : i32, i32
  }
}

</mosaic_0001>

<llo_original>
// kernel: tpu_custom_call.1
$region0: #{tpu_custom_call.1}
  #allocation0 [shape = 'u32[]', space=smem, size = 0x4, offset = 0x4, fixed_abs, tag = 'smem constant byte address 0x4 - core index']
  #allocation1 [shape = 'u32[144,128]{1,0:T(1,128)}', space=vmem, size = 0x12000, scoped, tag = 'internal scratch']
  %s0 = inlined_call_operand.hbm [shape: f32[8,32], index: 0, kind: input, shape index: {}]
  %s1 = inlined_call_operand.hbm [shape: f32[8,32], index: 1, kind: input, shape index: {}]
  %s2 = inlined_call_operand.hbm [shape: f32[8,32], index: 2, kind: output, shape index: {0}]
  %s3 = inlined_call_operand.hbm [shape: f32[8,32], index: 3, kind: output, shape index: {1}]
  %4 = xla_tuple %s2, %s3
  %s5 = sld [smem:[#allocation0]]
  $region34: #{tpu_custom_call.1} parent=0
    _
  %s7 = ssub.s32 1, %s5
  %s8 = scalar_select 0, %s7, %s5
  $region1: #{tpu_custom_call.1} parent=0
    #allocation2 [shape = 'u8[4096]{0}', space=vmem, size = 0x1000, scoped, tag = 'input window, operand 0, single buffered']
    #allocation3 [shape = 's32[1]{0}', space=sflag, size = 0x4, scoped, tag = 'scoped memory for tpu_custom_call.1']
    #allocation4 [shape = 's32[1]{0}', space=sflag, size = 0x4, scoped, tag = 'scoped memory for tpu_custom_call.1']
    #allocation5 [shape = 'u8[4096]{0}', space=vmem, size = 0x1000, scoped, tag = 'input window, operand 1, single buffered']
    #allocation6 [shape = 's32[1]{0}', space=sflag, size = 0x4, scoped, tag = 'scoped memory for tpu_custom_call.1']
    #allocation7 [shape = 'u8[4096]{0}', space=vmem, size = 0x1000, scoped, tag = 'output window, operand 0, single buffered']
    #allocation8 [shape = 'u8[4096]{0}', space=vmem, size = 0x1000, scoped, tag = 'output window, operand 1, single buffered']
    #allocation9 [shape = 's32[1]{0}', space=sflag, size = 0x4, scoped, tag = 'scoped memory for tpu_custom_call.1']
    %9 = vsyncpa [#allocation3], 0
    %10 = vsyncpa [#allocation6], 0
    %11 = vsyncpa [#allocation4], 0
    %12 = vsyncpa [#allocation9], 0
    // Predicated region
    $region2: #{tpu_custom_call.1} parent=1 // pred_check
      _
    $region3: #{tpu_custom_call.1} parent=1 // pred_check_branch
      %14 = sbr.rel (0) target = $region5
    $region4: #{tpu_custom_call.1} parent=1 // pred_region
      %s16 = ssub.s32 128, 128
      %17 = vsyncadd [#allocation3], %s16
      %s19 = sshll.u32 [#allocation2], 4
      %s20 = int_to_ptr.vmem [resolvable:$true] %s19
      %22 = dma.hbm_to_vmem [thread:$0]  %s0, 128, %s20, [#allocation3]
    $region5: #{tpu_custom_call.1} parent=1 // pred_fallthru
      _
    // Predicated region
    $region6: #{tpu_custom_call.1} parent=1 // pred_check
      _
    $region7: #{tpu_custom_call.1} parent=1 // pred_check_branch
      %24 = sbr.rel (0) target = $region9
    $region8: #{tpu_custom_call.1} parent=1 // pred_region
      %s26 = ssub.s32 128, 128
      %27 = vsyncadd [#allocation6], %s26
      %s29 = sshll.u32 [#allocation5], 4
      %s30 = int_to_ptr.vmem [resolvable:$true] %s29
      %32 = dma.hbm_to_vmem [thread:$0]  %s1, 128, %s30, [#allocation6]
    $region9: #{tpu_custom_call.1} parent=1 // pred_fallthru
      _
    // Predicated region
    $region10: #{tpu_custom_call.1} parent=1 // pred_check
      _
    $region11: #{tpu_custom_call.1} parent=1 // pred_check_branch
      %34 = sbr.rel (0) target = $region13
    $region12: #{tpu_custom_call.1} parent=1 // pred_region
      %35 = dma.done [#allocation3], 128
    $region13: #{tpu_custom_call.1} parent=1 // pred_fallthru
      _
    // Predicated region
    $region14: #{tpu_custom_call.1} parent=1 // pred_check
      _
    $region15: #{tpu_custom_call.1} parent=1 // pred_check_branch
      %37 = sbr.rel (0) target = $region17
    $region16: #{tpu_custom_call.1} parent=1 // pred_region
      %38 = dma.done [#allocation6], 128
    $region17: #{tpu_custom_call.1} parent=1 // pred_fallthru
      _
    %v39 = vld [vmem:[#allocation2] sm:$0xff]
    %v40 = vld [vmem:[#allocation5] sm:$0xff]
    %v41 = vmul.f32 %v39, %v39
    %vm42 = vcmask 261120
    %v43 = vsel %vm42, %v41, 0.0
    %44 = vadd.xlane.f32.xlu0 %v43
    %v45 = vpop.xlane.xlu0 %44
    %v46 = vmul.f32 %v40, %v40
    %v47 = vsel %vm42, %v46, 0.0
    %48 = vadd.xlane.f32.xlu0 %v47
    %v49 = vpop.xlane.xlu0 %48
    %v50 = vmax.f32 %v45, 1e-24
    %v51 = vrsqrt.pop %v50
    %v52 = vmul.f32 %v51, 14.285714
    %v53 = vmax.f32 %v49, 1e-24
    %v54 = vrsqrt.pop %v53
    %v55 = vmul.f32 %v39, %v52
    %56 = vst.msk [vmem:[#allocation7] sm:$0xff] %vm42, %v55
    %v57 = vmul.f32 %v40, %v54
    %58 = vst.msk [vmem:[#allocation8] sm:$0xff] %vm42, %v57
    // Predicated region
    $region18: #{tpu_custom_call.1} parent=1 // pred_check
      _
    $region19: #{tpu_custom_call.1} parent=1 // pred_check_branch
      %60 = sbr.rel (0) target = $region21
    $region20: #{tpu_custom_call.1} parent=1 // pred_region
      %s62 = ssub.s32 128, 128
      %63 = vsyncadd [#allocation4], %s62
      %s65 = sshll.u32 [#allocation7], 4
      %s66 = int_to_ptr.vmem [resolvable:$true] %s65
      %68 = dma.vmem_to_hbm [thread:$0]  %s66, 128, %s2, [#allocation4]
    $region21: #{tpu_custom_call.1} parent=1 // pred_fallthru
      _
    // Predicated region
    $region22: #{tpu_custom_call.1} parent=1 // pred_check
      _
    $region23: #{tpu_custom_call.1} parent=1 // pred_check_branch
      %70 = sbr.rel (0) target = $region25
    $region24: #{tpu_custom_call.1} parent=1 // pred_region
      %s72 = ssub.s32 128, 128
      %73 = vsyncadd [#allocation9], %s72
      %s75 = sshll.u32 [#allocation8], 4
      %s76 = int_to_ptr.vmem [resolvable:$true] %s75
      %78 = dma.vmem_to_hbm [thread:$0]  %s76, 128, %s3, [#allocation9]
    $region25: #{tpu_custom_call.1} parent=1 // pred_fallthru
      _
    // Predicated region
    $region26: #{tpu_custom_call.1} parent=1 // pred_check
      _
    $region27: #{tpu_custom_call.1} parent=1 // pred_check_branch
      %80 = sbr.rel (0) target = $region29
    $region28: #{tpu_custom_call.1} parent=1 // pred_region
      %81 = dma.done [#allocation4], 128
    $region29: #{tpu_custom_call.1} parent=1 // pred_fallthru
      _
    // Predicated region
    $region30: #{tpu_custom_call.1} parent=1 // pred_check
      _
    $region31: #{tpu_custom_call.1} parent=1 // pred_check_branch
      %83 = sbr.rel (0) target = $region33
    $region32: #{tpu_custom_call.1} parent=1 // pred_region
      %84 = dma.done [#allocation9], 128
    $region33: #{tpu_custom_call.1} parent=1 // pred_fallthru
      _
    %85 = vsyncpa [#allocation3], 1
    %86 = vsyncpa [#allocation6], 1
    %87 = vsyncpa [#allocation4], 1
    %88 = vsyncpa [#allocation9], 1

</llo_original>
